<compile_context>
chip_gen: v7x
topology: tpu7x:2x2x1
jax: 0.10.0
libtpu: 0.0.40
codegen_flags: <defaults>
</compile_context>

<pallas_src>
import functools

import jax
import jax.numpy as jnp
from jax.experimental import pallas as pl
from jax.experimental.pallas import tpu as pltpu

_NEG_BIG = jnp.float32(-1e30)


def _round_up(a, b):
    return (a + b - 1) // b * b


# ---------------------------------------------------------------------------
# Kernel 1: fused input projection   proj = x @ [Wl | Wr] + [bl | br]
# ---------------------------------------------------------------------------
def _proj_kernel(x_ref, w_ref, b_ref, o_ref):
    o_ref[...] = (
        jnp.dot(x_ref[...], w_ref[...], preferred_element_type=jnp.float32)
        + b_ref[...]
    )


def _project(x, w, b, *, tm):
    n, f = x.shape
    pw = w.shape[1]
    return pl.pallas_call(
        _proj_kernel,
        out_shape=jax.ShapeDtypeStruct((n, pw), jnp.float32),
        grid=(n // tm,),
        in_specs=[
            pl.BlockSpec((tm, f), lambda i: (i, 0)),      # x rows (streamed)
            pl.BlockSpec((f, pw), lambda i: (0, 0)),      # fused W (resident)
            pl.BlockSpec((1, pw), lambda i: (0, 0)),      # fused bias (resident)
        ],
        out_specs=pl.BlockSpec((tm, pw), lambda i: (i, 0)),
        compiler_params=pltpu.CompilerParams(
            dimension_semantics=("parallel",)),
    )(x, w, b)


# ---------------------------------------------------------------------------
# Kernel 2: GATv2 attention + aggregation over a tile of destination rows.
# ---------------------------------------------------------------------------
def _gatv2_attn_kernel(att_ref, proj_src_ref, proj_dst_ref, maskb_ref,
                       bias_ref, o_ref, *, heads, out_ch, concat, apply_elu,
                       out_pad):
    """proj layout along lanes: [ xl (H*C) | xr (H*C) | zero padding ].

    att_ref      : SMEM [H, C]        attention vector per head (scalar reads)
    proj_src_ref : VMEM [Np, PW]      all-node projections (resident; xl part)
    proj_dst_ref : VMEM [TM, PW]      dst-tile projections (xr part)
    maskb_ref    : VMEM [TM, Np]      additive mask: 0 on edges, -1e30 elsewhere
    bias_ref     : VMEM [1, out_dim]  layer output bias
    o_ref        : VMEM [TM, out_p]   lane-dense (128-padded) output slab
    """
    hc = heads * out_ch
    proj_src = proj_src_ref[...]
    proj_dst = proj_dst_ref[...]
    maskb = maskb_ref[...]                       # [TM, Np]

    xl_all = proj_src[:, :hc]                    # [Np, H*C] source features
    xl_t = xl_all.T                              # [H*C, Np] one XLU transpose

    head_outs = []
    for h in range(heads):                       # static unroll over heads
        xr_h = proj_dst[:, hc + h * out_ch: hc + (h + 1) * out_ch]  # [TM, C]

        # e[i, j] = sum_c att[h, c] * leaky_relu(xr[i, c] + xl[j, c]) + mask
        e = maskb                                # masking folded into init
        for c in range(out_ch):                  # lane-dense over N_src
            s = xr_h[:, c:c + 1] + xl_t[h * out_ch + c: h * out_ch + c + 1, :]
            s = jnp.maximum(s, 0.2 * s)          # leaky_relu(0.2)
            e = e + att_ref[h, c] * s            # scalar from SMEM

        # masked softmax over source nodes (rows kept whole -> exact softmax)
        m = jnp.max(e, axis=-1, keepdims=True)
        p = jnp.exp(e - m)
        rs = jnp.sum(p, axis=-1, keepdims=True)

        # weighted aggregation (MXU); fold 1/rs after the matmul (O(TM*C)).
        # TODO(synk): cast p / xl to bf16 here for large-N MXU throughput.
        agg = jnp.dot(p, xl_all[:, h * out_ch:(h + 1) * out_ch],
                      preferred_element_type=jnp.float32)   # [TM, C]
        head_outs.append(agg * pl.reciprocal(rs, approx=True))

    if concat:
        out = jnp.concatenate(head_outs, axis=-1)            # [TM, H*C]
    else:
        out = head_outs[0]
        for ho in head_outs[1:]:
            out = out + ho
        out = out * jnp.float32(1.0 / heads)                 # mean over heads

    out = out + bias_ref[...]
    if apply_elu:
        # overflow-safe ELU: exp only sees non-positive arguments
        out = jnp.where(out > 0.0, out, jnp.exp(jnp.minimum(out, 0.0)) - 1.0)

    if out_pad:
        out = jnp.concatenate(
            [out, jnp.zeros((out.shape[0], out_pad), jnp.float32)], axis=-1)
    o_ref[...] = out                                         # lane-dense store


# ---------------------------------------------------------------------------
# Layer wrapper
# ---------------------------------------------------------------------------
def gatv2_layer(x_pad, mask_bias, wl, bl, wr, br, att, bias, *,
                heads, out_ch, concat, apply_elu, tm):
    n_pad, f_pad = x_pad.shape
    hc = heads * out_ch
    pw = _round_up(2 * hc, 128)                 # fused/padded projection width

    # Fuse lin_l / lin_r into one lane-dense matmul operand (zero padded).
    w = jnp.zeros((f_pad, pw), jnp.float32)
    w = w.at[:wl.shape[0], :hc].set(wl)
    w = w.at[:wr.shape[0], hc:2 * hc].set(wr)
    b = jnp.zeros((1, pw), jnp.float32)
    b = b.at[:, :hc].set(bl)
    b = b.at[:, hc:2 * hc].set(br)

    proj = _project(x_pad, w, b, tm=tm)          # [Np, PW]

    out_dim = hc if concat else out_ch
    out_p = _round_up(out_dim, 128)
    kernel = functools.partial(
        _gatv2_attn_kernel, heads=heads, out_ch=out_ch, concat=concat,
        apply_elu=apply_elu, out_pad=out_p - out_dim)

    out = pl.pallas_call(
        kernel,
        out_shape=jax.ShapeDtypeStruct((n_pad, out_p), jnp.float32),
        grid=(n_pad // tm,),
        in_specs=[
            pl.BlockSpec(memory_space=pltpu.MemorySpace.SMEM),    # att
            pl.BlockSpec((n_pad, pw), lambda i: (0, 0)),          # proj (src, resident)
            pl.BlockSpec((tm, pw), lambda i: (i, 0)),             # proj (dst tile)
            pl.BlockSpec((tm, n_pad), lambda i: (i, 0)),          # mask rows (streamed)
            pl.BlockSpec((1, out_dim), lambda i: (0, 0)),         # layer bias
        ],
        out_specs=pl.BlockSpec((tm, out_p), lambda i: (i, 0)),
        compiler_params=pltpu.CompilerParams(
            dimension_semantics=("parallel",)),
    )(att, proj, proj, mask_bias, bias)
    return out


# ---------------------------------------------------------------------------
# Parameters / graph helpers / full net
# ---------------------------------------------------------------------------
def _glorot(key, shape):
    fan_in, fan_out = shape[0], shape[-1]
    lim = (6.0 / (fan_in + fan_out)) ** 0.5
    return jax.random.uniform(key, shape, jnp.float32, -lim, lim)


def init_gatv2_params(key, in_ch, hidden_ch, out_ch, heads):
    ks = jax.random.split(key, 8)
    p = {}
    # conv1: GATv2Conv(in_ch, hidden_ch, heads, concat=True)
    p["wl1"] = _glorot(ks[0], (in_ch, heads * hidden_ch))
    p["bl1"] = jnp.zeros((1, heads * hidden_ch), jnp.float32)
    p["wr1"] = _glorot(ks[1], (in_ch, heads * hidden_ch))
    p["br1"] = jnp.zeros((1, heads * hidden_ch), jnp.float32)
    p["att1"] = _glorot(ks[2], (heads, hidden_ch))
    p["bias1"] = jnp.zeros((1, heads * hidden_ch), jnp.float32)
    # conv2: GATv2Conv(hidden_ch*heads, out_ch, heads=1, concat=False)
    p["wl2"] = _glorot(ks[3], (heads * hidden_ch, out_ch))
    p["bl2"] = jnp.zeros((1, out_ch), jnp.float32)
    p["wr2"] = _glorot(ks[4], (heads * hidden_ch, out_ch))
    p["br2"] = jnp.zeros((1, out_ch), jnp.float32)
    p["att2"] = _glorot(ks[5], (1, out_ch))
    p["bias2"] = jnp.zeros((1, out_ch), jnp.float32)
    return p


def edge_index_to_mask_bias(edge_index, n, n_pad):
    """Additive mask: 0 where edge j -> i exists (self-loops added), -1e30 else.

    Padded rows/cols stay fully masked; real rows always have the self-loop so
    the softmax never sees an all-masked row (no 0/0).
    """
    src = jnp.concatenate([edge_index[0], jnp.arange(n)])
    dst = jnp.concatenate([edge_index[1], jnp.arange(n)])
    mb = jnp.full((n_pad, n_pad), _NEG_BIG, jnp.float32)
    # TODO(synk): store as bf16 to halve HBM traffic for large N on v5e.
    return mb.at[dst, src].set(0.0)


def gatv2_net(params, x, edge_index, *, hidden_ch, out_ch, heads, tm=None):
    n, f = x.shape
    if tm is None:
        tm = min(128, _round_up(n, 8))
    tm = max(8, _round_up(tm, 8))
    n_pad = _round_up(max(n, tm), tm)
    f_pad = _round_up(f, 128)

    x_pad = jnp.zeros((n_pad, f_pad), jnp.float32).at[:n, :f].set(x)
    mask_bias = edge_index_to_mask_bias(edge_index, n, n_pad)

    # conv1 + ELU (ELU fused into the kernel epilogue)
    h = gatv2_layer(x_pad, mask_bias, params["wl1"], params["bl1"],
                    params["wr1"], params["br1"], params["att1"],
                    params["bias1"], heads=heads, out_ch=hidden_ch,
                    concat=True, apply_elu=True, tm=tm)
    # conv2 (single head, mean/identity, no activation); h is already a
    # lane-padded [n_pad, 128] slab whose extra columns are exactly zero.
    y = gatv2_layer(h, mask_bias, params["wl2"], params["bl2"],
                    params["wr2"], params["br2"], params["att2"],
                    params["bias2"], heads=1, out_ch=out_ch,
                    concat=False, apply_elu=False, tm=tm)
    return y[:n, :out_ch]


if __name__ == "__main__":
    N, IN_CH, HID_CH, OUT_CH, HEADS = 16, 8, 8, 4, 4

    key = jax.random.PRNGKey(0)
    k_x, k_p = jax.random.split(key)

    x = jax.random.normal(k_x, (N, IN_CH), jnp.float32)

    # Deterministic simple graph: bidirectional ring (no duplicate edges,
    # no self-loops — self-loops are added inside edge_index_to_mask_bias).
    idx = jnp.arange(N)
    src = jnp.concatenate([idx, (idx + 1) % N])
    dst = jnp.concatenate([(idx + 1) % N, idx])
    edge_index = jnp.stack([src, dst]).astype(jnp.int32)   # [2, 32]

    params = init_gatv2_params(k_p, IN_CH, HID_CH, OUT_CH, HEADS)

    # tm=8 -> 2-step row grid even on the toy graph (exercises the pipeline).
    out = gatv2_net(params, x, edge_index,
                    hidden_ch=HID_CH, out_ch=OUT_CH, heads=HEADS, tm=8)
    out = jax.block_until_ready(out)

    assert out.shape == (N, OUT_CH)
    assert bool(jnp.all(jnp.isfinite(out)))
    print("KERNEL_OK")
</pallas_src>

<mosaic_0001>
module attributes {stable_mosaic.version = 11 : i64} {
  func.func @_proj_kernel(%arg0: i32, %arg1: memref<8x128xf32, #tpu.memory_space<vmem>>, %arg2: memref<128x128xf32, #tpu.memory_space<vmem>>, %arg3: memref<1x128xf32, #tpu.memory_space<vmem>>, %arg4: memref<8x128xf32, #tpu.memory_space<vmem>>) attributes {dimension_semantics = [#tpu.dimension_semantics<parallel>], iteration_bounds = array<i64: 2>, scalar_prefetch = 0 : i64, scratch_operands = 0 : i64, tpu.core_type = #tpu.core_type<tc>, window_params = [{transform_indices = @transform_0, window_bounds = array<i64: 8, 128>}, {pipeline_mode = #tpu.pipeline_mode<synchronous>, transform_indices = @transform_1, window_bounds = array<i64: 128, 128>}, {pipeline_mode = #tpu.pipeline_mode<synchronous>, transform_indices = @transform_2, window_bounds = array<i64: 1, 128>}, {transform_indices = @transform_3, window_bounds = array<i64: 8, 128>}]} {
    %c0 = arith.constant 0 : index
    %c0_0 = arith.constant 0 : index
    %0 = vector.load %arg1[%c0, %c0_0] : memref<8x128xf32, #tpu.memory_space<vmem>>, vector<8x128xf32>
    %c0_1 = arith.constant 0 : index
    %c0_2 = arith.constant 0 : index
    %1 = vector.load %arg2[%c0_1, %c0_2] : memref<128x128xf32, #tpu.memory_space<vmem>>, vector<128x128xf32>
    %cst = arith.constant dense<0.000000e+00> : vector<8x128xf32>
    %2 = tpu.matmul %0, %1, %cst {dimension_numbers = #tpu.dot_dimension_numbers<[1], [0], [0], [1], [0, 0, 1, 1], [], []>} : vector<8x128xf32>, vector<128x128xf32>, vector<8x128xf32> -> vector<8x128xf32>
    %c0_3 = arith.constant 0 : index
    %c0_4 = arith.constant 0 : index
    %3 = vector.load %arg3[%c0_3, %c0_4] : memref<1x128xf32, #tpu.memory_space<vmem>>, vector<1x128xf32>
    %4 = vector.broadcast %3 : vector<1x128xf32> to vector<8x128xf32>
    %5 = arith.addf %2, %4 : vector<8x128xf32>
    %c0_5 = arith.constant 0 : index
    %c0_6 = arith.constant 0 : index
    %6 = vector.load %arg4[%c0_5, %c0_6] : memref<8x128xf32, #tpu.memory_space<vmem>>, vector<8x128xf32>
    tpu.vector_store %arg4[%c0_5, %c0_6], %5 {strides = array<i32>} : memref<8x128xf32, #tpu.memory_space<vmem>>, vector<8x128xf32>,
    return
  }
  func.func @transform_0(%arg0: i32) -> (i32, i32) {
    %c0_i32 = arith.constant 0 : i32
    %c0_i32_0 = arith.constant 0 : i32
    return %arg0, %c0_i32 : i32, i32
  }
  func.func @transform_1(%arg0: i32) -> (i32, i32) {
    %c0_i32 = arith.constant 0 : i32
    %c0_i32_0 = arith.constant 0 : i32
    %c0_i32_1 = arith.constant 0 : i32
    return %c0_i32, %c0_i32_0 : i32, i32
  }
  func.func @transform_2(%arg0: i32) -> (i32, i32) {
    %c0_i32 = arith.constant 0 : i32
    %c0_i32_0 = arith.constant 0 : i32
    %c0_i32_1 = arith.constant 0 : i32
    return %c0_i32, %c0_i32_0 : i32, i32
  }
  func.func @transform_3(%arg0: i32) -> (i32, i32) {
    %c0_i32 = arith.constant 0 : i32
    %c0_i32_0 = arith.constant 0 : i32
    return %arg0, %c0_i32 : i32, i32
  }
}

</mosaic_0001>

<llo_original>
// kernel: tpu_custom_call.1
$region0: #{tpu_custom_call.1}
  #allocation0 [shape = 'u32[]', space=smem, size = 0x4, offset = 0x4, fixed_abs, tag = 'smem constant byte address 0x4 - core index']
  #allocation1 [shape = 'u32[144,128]{1,0:T(1,128)}', space=vmem, size = 0x12000, scoped, tag = 'internal scratch']
  %s0 = inlined_call_operand.hbm [shape: f32[16,128], index: 0, kind: input, shape index: {}]
  %s1 = inlined_call_operand.hbm [shape: f32[128,128], index: 1, kind: input, shape index: {}]
  %s2 = inlined_call_operand.vmem [shape: f32[1,128], index: 2, kind: input, shape index: {}]
  %s3 = inlined_call_operand.hbm [shape: f32[16,128], index: 3, kind: output, shape index: {}]
  %s4 = sld [smem:[#allocation0]]
  $region53: #{tpu_custom_call.1} parent=0
    _
  %s6 = ssub.s32 1, %s4
  %s7 = scalar_select 0, %s6, %s4
  $region1: #{tpu_custom_call.1} parent=0
    #allocation2 [shape = 'u8[8192]{0}', space=vmem, size = 0x2000, scoped, tag = 'input window, operand 0']
    #allocation3 [shape = 's32[2]{0}', space=sflag, size = 0x8, scoped, tag = 'scoped memory for tpu_custom_call.1']
    #allocation4 [shape = 's32[2]{0}', space=sflag, size = 0x8, scoped, tag = 'scoped memory for tpu_custom_call.1']
    #allocation5 [shape = 'u8[65536]{0}', space=vmem, size = 0x10000, scoped, tag = 'input window, operand 1, single buffered']
    #allocation6 [shape = 's32[1]{0}', space=sflag, size = 0x4, scoped, tag = 'scoped memory for tpu_custom_call.1']
    #allocation7 [shape = 'u8[8192]{0}', space=vmem, size = 0x2000, scoped, tag = 'output window, operand 0']
    %8 = vsyncpa [#allocation3], 0
    %s9 = scalar_lea.sflag [#allocation3], 1
    %10 = vsyncpa %s9, 0
    %11 = vsyncpa [#allocation6], 0
    %12 = vsyncpa [#allocation4], 0
    %s13 = scalar_lea.sflag [#allocation4], 1
    %14 = vsyncpa %s13, 0
    loop: start=0, step=1, limit=4
    $region2: #{tpu_custom_call.1} parent=1 // loop_pre_header
      _
    $region3: #{tpu_custom_call.1} parent=1 // loop_header
      %s16 = sphi 0, %s20
      %p17 = scmp.ge.s32.totalorder %s16, 4
      %s26 = sphi 0, %s28
      %s29 = sphi 0, %s26
      %s30 = sphi 0, %s29
      %s46 = sphi 0, %s30
      %s50 = sphi 0, %s50
      %s52 = sphi 0, %s50
      %s53 = sphi 0, %s52
      %s67 = sphi 0, %s53
      %s71 = sphi 0, %s71
      %s73 = sphi 0, %s71
      %s74 = sphi 0, %s73
      %s88 = sphi 0, %s74
      %s94 = sphi 0, %s96
      %s97 = sphi 0, %s94
      %s98 = sphi 0, %s97
      %s114 = sphi 0, %s98
    $region4: #{tpu_custom_call.1} parent=1 // loop_header_branch
      %19 = sbr.rel (%p17) target = $region8
    $region5: #{tpu_custom_call.1} parent=1 // loop_body
      %s21 = ssub.s32 %s16, 1
      %s22 = ssub.s32 %s16, 2
      %s23 = sadd.s32 %s16, 1
      %s24 = ssub.s32 %s16, %s23
      %p25 = scmp.eq.s32.totalorder %s24, 0
      %s27 = sadd.s32 %s26, 1
      %s28 = scalar_select %p25, %s26, %s27
      %p31 = pneg %p25
      %p32 = scmp.eq.s32.totalorder %s16, 1
      %p33 = por %p31, %p32
      %p34 = scmp.ne.s32.totalorder %s26, %s29
      %p35 = scmp.eq.s32.totalorder %s16, 0
      %p36 = por %p34, %p35
      %p37 = scmp.ne.s32.totalorder %s26, %s29
      %p38 = scmp.eq.s32.totalorder %s21, 1
      %p39 = por %p37, %p38
      %p40 = scmp.ne.s32.totalorder %s29, %s30
      %p41 = scmp.eq.s32.totalorder %s21, 0
      %p42 = por %p40, %p41
      %p43 = scmp.ne.s32.totalorder %s29, %s30
      %p44 = scmp.eq.s32.totalorder %s22, 1
      %p45 = por %p43, %p44
      %p47 = scmp.ne.s32.totalorder %s30, %s46
      %p48 = scmp.eq.s32.totalorder %s22, 0
      %p49 = por %p47, %p48
      %s51 = sadd.s32 %s50, 1
      %p54 = scmp.eq.s32.totalorder %s16, 1
      %p55 = scmp.ne.s32.totalorder %s50, %s52
      %p56 = scmp.eq.s32.totalorder %s16, 0
      %p57 = por %p55, %p56
      %p58 = scmp.ne.s32.totalorder %s50, %s52
      %p59 = scmp.eq.s32.totalorder %s21, 1
      %p60 = por %p58, %p59
      %p61 = scmp.ne.s32.totalorder %s52, %s53
      %p62 = scmp.eq.s32.totalorder %s21, 0
      %p63 = por %p61, %p62
      %p64 = scmp.ne.s32.totalorder %s52, %s53
      %p65 = scmp.eq.s32.totalorder %s22, 1
      %p66 = por %p64, %p65
      %p68 = scmp.ne.s32.totalorder %s53, %s67
      %p69 = scmp.eq.s32.totalorder %s22, 0
      %p70 = por %p68, %p69
      %s72 = sadd.s32 %s71, 1
      %p75 = scmp.eq.s32.totalorder %s16, 1
      %p76 = scmp.ne.s32.totalorder %s71, %s73
      %p77 = scmp.eq.s32.totalorder %s16, 0
      %p78 = por %p76, %p77
      %p79 = scmp.ne.s32.totalorder %s71, %s73
      %p80 = scmp.eq.s32.totalorder %s21, 1
      %p81 = por %p79, %p80
      %p82 = scmp.ne.s32.totalorder %s73, %s74
      %p83 = scmp.eq.s32.totalorder %s21, 0
      %p84 = por %p82, %p83
      %p85 = scmp.ne.s32.totalorder %s73, %s74
      %p86 = scmp.eq.s32.totalorder %s22, 1
      %p87 = por %p85, %p86
      %p89 = scmp.ne.s32.totalorder %s74, %s88
      %p90 = scmp.eq.s32.totalorder %s22, 0
      %p91 = por %p89, %p90
      %s92 = ssub.s32 %s16, %s23
      %p93 = scmp.eq.s32.totalorder %s92, 0
      %s95 = sadd.s32 %s94, 1
      %s96 = scalar_select %p93, %s94, %s95
      %p99 = pneg %p93
      %p100 = scmp.eq.s32.totalorder %s16, 1
      %p101 = por %p99, %p100
      %p102 = scmp.ne.s32.totalorder %s94, %s97
      %p103 = scmp.eq.s32.totalorder %s16, 0
      %p104 = por %p102, %p103
      %p105 = scmp.ne.s32.totalorder %s94, %s97
      %p106 = scmp.eq.s32.totalorder %s21, 1
      %p107 = por %p105, %p106
      %p108 = scmp.ne.s32.totalorder %s97, %s98
      %p109 = scmp.eq.s32.totalorder %s21, 0
      %p110 = por %p108, %p109
      %p111 = scmp.ne.s32.totalorder %s97, %s98
      %p112 = scmp.eq.s32.totalorder %s22, 1
      %p113 = por %p111, %p112
      %p115 = scmp.ne.s32.totalorder %s98, %s114
      %p116 = scmp.eq.s32.totalorder %s22, 0
      %p117 = por %p115, %p116
      %p118 = scmp.le.s32.totalorder 1, %s16
      %p119 = scmp.lt.s32.totalorder %s16, 3
      %p120 = pnand %p118, %p119
      %p121 = pneg %p120
      // Predicated region
      $region9: #{tpu_custom_call.1} parent=5 // pred_check
        _
      $region10: #{tpu_custom_call.1} parent=5 // pred_check_branch
        %123 = sbr.rel (%p120) target = $region12
      $region11: #{tpu_custom_call.1} parent=5 // pred_region
        %s124 = ssub.s32 %s16, 1
        // Predicated region
        $region13: #{tpu_custom_call.1} parent=11 // pred_check
          %p125 = pneg %p63
        $region14: #{tpu_custom_call.1} parent=11 // pred_check_branch
          %127 = sbr.rel (%p125) target = $region16
        $region15: #{tpu_custom_call.1} parent=11 // pred_region
          %s129 = ssub.s32 2048, 2048
          %130 = vsyncadd [#allocation6], %s129
          %s131 = sshll.u32 [#allocation5], 4
          %s132 = int_to_ptr.vmem [resolvable:$true] %s131
          %137 = dma.hbm_to_vmem [thread:$0]  %s1, 2048, %s132, [#allocation6], 128, 128, 8
        $region16: #{tpu_custom_call.1} parent=11 // pred_fallthru
          _
        // Predicated region
        $region17: #{tpu_custom_call.1} parent=11 // pred_check
          %p138 = pneg %p84
        $region18: #{tpu_custom_call.1} parent=11 // pred_check_branch
          %140 = sbr.rel (%p138) target = $region20
        $region19: #{tpu_custom_call.1} parent=11 // pred_region
          _
        $region20: #{tpu_custom_call.1} parent=11 // pred_fallthru
          _
      $region12: #{tpu_custom_call.1} parent=5 // pred_fallthru
        _
      %p141 = scmp.lt.s32.totalorder %s16, 2
      // Predicated region
      $region21: #{tpu_custom_call.1} parent=5 // pred_check
        %p142 = pneg %p141
      $region22: #{tpu_custom_call.1} parent=5 // pred_check_branch
        %144 = sbr.rel (%p142) target = $region24
      $region23: #{tpu_custom_call.1} parent=5 // pred_region
        // Predicated region
        $region25: #{tpu_custom_call.1} parent=23 // pred_check
          %p145 = pneg %p36
        $region26: #{tpu_custom_call.1} parent=23 // pred_check_branch
          %147 = sbr.rel (%p145) target = $region28
        $region27: #{tpu_custom_call.1} parent=23 // pred_region
          %s148 = sand.u32 %s26, 1
          %s149 = scalar_lea.sflag [#allocation3], %s148
          %s150 = sand.u32 %s26, 1
          %s151 = smul.addr %s150, 8
          %s152 = scalar_lea.vmem [#allocation2], %s151
          %s154 = ssub.s32 128, 128
          %155 = vsyncadd %s149, %s154
          %s156 = smul.addr %s16, 128
          %s157 = scalar_lea.hbm %s0, %s156
          %s159 = sshll.u32 %s152, 4
          %s160 = int_to_ptr.vmem [resolvable:$true] %s159
          %162 = dma.hbm_to_vmem [thread:$0]  %s157, 128, %s160, %s149
        $region28: #{tpu_custom_call.1} parent=23 // pred_fallthru
          _
      $region24: #{tpu_custom_call.1} parent=5 // pred_fallthru
        _
      %p163 = scmp.le.s32.totalorder 1, %s16
      %p164 = scmp.lt.s32.totalorder %s16, 3
      %p165 = pnand %p163, %p164
      %p166 = pneg %p165
      // Predicated region
      $region29: #{tpu_custom_call.1} parent=5 // pred_check
        _
      $region30: #{tpu_custom_call.1} parent=5 // pred_check_branch
        %168 = sbr.rel (%p165) target = $region32
      $region31: #{tpu_custom_call.1} parent=5 // pred_region
        %s169 = ssub.s32 %s16, 1
        %s170 = sand.u32 %s29, 1
        %s171 = scalar_lea.sflag [#allocation3], %s170
        %s172 = sand.u32 %s29, 1
        %s173 = smul.addr %s172, 8
        %s174 = scalar_lea.vmem [#allocation2], %s173
        // Predicated region
        $region33: #{tpu_custom_call.1} parent=31 // pred_check
          %p175 = pneg %p42
        $region34: #{tpu_custom_call.1} parent=31 // pred_check_branch
          %177 = sbr.rel (%p175) target = $region36
        $region35: #{tpu_custom_call.1} parent=31 // pred_region
          %178 = dma.done %s171, 128
        $region36: #{tpu_custom_call.1} parent=31 // pred_fallthru
          _
        // Predicated region
        $region37: #{tpu_custom_call.1} parent=31 // pred_check
          %p179 = pneg %p63
        $region38: #{tpu_custom_call.1} parent=31 // pred_check_branch
          %181 = sbr.rel (%p179) target = $region40
        $region39: #{tpu_custom_call.1} parent=31 // pred_region
          %182 = dma.done [#allocation6], 2048
        $region40: #{tpu_custom_call.1} parent=31 // pred_fallthru
          _
        %s183 = sand.u32 %s29, 1
        %s184 = scalar_lea.sflag [#allocation3], %s183
        %s185 = sand.u32 %s29, 1
        %s186 = smul.addr %s185, 8
        %s187 = scalar_lea.vmem [#allocation2], %s186
        %p188 = pneg %p42
        %p189 = pneg %p39
        %p190 = pneg %p63
        %p191 = pneg %p60
        %p192 = pneg %p84
        %p193 = pneg %p81
        %p194 = pneg %p110
        %p195 = pneg %p107
        %s196 = sand.u32 %s97, 1
        %s197 = scalar_lea.sflag [#allocation4], %s196
        %s198 = sand.u32 %s97, 1
        %s199 = smul.addr %s198, 8
        %s200 = scalar_lea.vmem [#allocation7], %s199
        %v201 = vld [vmem:[%s174] sm:$0xff]
        %v202 = vld [vmem:[#allocation5] sm:$0xff]
        %v203 = vld [vmem:[#allocation5 + $0x8] sm:$0xff]
        %v204 = vld [vmem:[#allocation5 + $0x10] sm:$0xff]
        %v205 = vld [vmem:[#allocation5 + $0x18] sm:$0xff]
        %v206 = vld [vmem:[#allocation5 + $0x20] sm:$0xff]
        %v207 = vld [vmem:[#allocation5 + $0x28] sm:$0xff]
        %v208 = vld [vmem:[#allocation5 + $0x30] sm:$0xff]
        %v209 = vld [vmem:[#allocation5 + $0x38] sm:$0xff]
        %v210 = vld [vmem:[#allocation5 + $0x40] sm:$0xff]
        %v211 = vld [vmem:[#allocation5 + $0x48] sm:$0xff]
        %v212 = vld [vmem:[#allocation5 + $0x50] sm:$0xff]
        %v213 = vld [vmem:[#allocation5 + $0x58] sm:$0xff]
        %v214 = vld [vmem:[#allocation5 + $0x60] sm:$0xff]
        %v215 = vld [vmem:[#allocation5 + $0x68] sm:$0xff]
        %v216 = vld [vmem:[#allocation5 + $0x70] sm:$0xff]
        %v217 = vld [vmem:[#allocation5 + $0x78] sm:$0xff]
        %v218 = vld [vmem:[%s2] sm:$0x1]
        %v220 = vlaneseq
        %v221 = vshrl.u32 %v220, 7
        %v222 = vsub.s32 0, %v221
        %v223 = vrot.slane %v218, %v222
        %225 = vmatprep.subr.mxu0 0.0
        %226 = vmatpush1.msra.mxu0 %v202
        %227 = vmatprep.subr.mxu0 0.0
        %228 = vmatpush1.msra.mxu0 %v203
        %229 = vmatprep.subr.mxu0 0.0
        %230 = vmatpush1.msra.mxu0 %v204
        %231 = vmatprep.subr.mxu0 0.0
        %232 = vmatpush1.msra.mxu0 %v205
        %233 = vmatprep.subr.mxu0 0.0
        %234 = vmatpush1.msra.mxu0 %v206
        %235 = vmatprep.subr.mxu0 0.0
        %236 = vmatpush1.msra.mxu0 %v207
        %237 = vmatprep.subr.mxu0 0.0
        %238 = vmatpush1.msra.mxu0 %v208
        %239 = vmatprep.subr.mxu0 0.0
        %240 = vmatpush1.msra.mxu0 %v209
        %241 = vmatprep.subr.mxu0 0.0
        %242 = vmatpush1.msra.mxu0 %v210
        %243 = vmatprep.subr.mxu0 0.0
        %244 = vmatpush1.msra.mxu0 %v211
        %245 = vmatprep.subr.mxu0 0.0
        %246 = vmatpush1.msra.mxu0 %v212
        %247 = vmatprep.subr.mxu0 0.0
        %248 = vmatpush1.msra.mxu0 %v213
        %249 = vmatprep.subr.mxu0 0.0
        %250 = vmatpush1.msra.mxu0 %v214
        %251 = vmatprep.subr.mxu0 0.0
        %252 = vmatpush1.msra.mxu0 %v215
        %253 = vmatprep.subr.mxu0 0.0
        %254 = vmatpush1.msra.mxu0 %v216
        %255 = vmatprep.subr.mxu0 0.0
        %256 = vmatpush1.msra.mxu0 %v217
        %257 = vmatprep.subr.mxu0 0.0
        %258 = vmatpush1.msra.mxu0 0.0
        %259 = vmatprep.subr.mxu0 0.0
        %260 = vmatpush1.msra.mxu0 0.0
        %261 = vmatprep.subr.mxu0 0.0
        %262 = vmatpush1.msra.mxu0 0.0
        %263 = vmatprep.subr.mxu0 0.0
        %264 = vmatpush1.msra.mxu0 0.0
        %265 = vmatprep.subr.mxu0 0.0
        %266 = vmatpush1.msra.mxu0 0.0
        %267 = vmatprep.subr.mxu0 0.0
        %268 = vmatpush1.msra.mxu0 0.0
        %269 = vmatprep.subr.mxu0 0.0
        %270 = vmatpush1.msra.mxu0 0.0
        %271 = vmatprep.subr.mxu0 0.0
        %272 = vmatpush1.msra.mxu0 0.0
        %273 = vmatprep.subr.mxu0 0.0
        %274 = vmatpush1.msra.mxu0 0.0
        %275 = vmatprep.subr.mxu0 0.0
        %276 = vmatpush1.msra.mxu0 0.0
        %277 = vmatprep.subr.mxu0 0.0
        %278 = vmatpush1.msra.mxu0 0.0
        %279 = vmatprep.subr.mxu0 0.0
        %280 = vmatpush1.msra.mxu0 0.0
        %281 = vmatprep.subr.mxu0 0.0
        %282 = vmatpush1.msra.mxu0 0.0
        %283 = vmatprep.subr.mxu0 0.0
        %284 = vmatpush1.msra.mxu0 0.0
        %285 = vmatprep.subr.mxu0 0.0
        %286 = vmatpush1.msra.mxu0 0.0
        %287 = vmatprep.subr.mxu0 0.0
        %288 = vmatpush1.msra.mxu0 0.0
        %289 = vmatprep.mubr.f32.mxu0 0.0
        %290 = vmatmul.mubr.f32.gmra.mrb[0].mxu0 %v201
        %v291 = vpop.f32.mrb[0].mxu0
        %v292 = vadd.f32 %v223, %v291
        %v293 = vpop.f32.mrb[0].mxu0
        %294 = vdwg.mxu0
        %295 = vst [vmem:[%s200] sm:$0xff] %v292
        %s296 = sand.u32 %s97, 1
        %s297 = scalar_lea.sflag [#allocation4], %s296
        %s298 = sand.u32 %s97, 1
        %s299 = smul.addr %s298, 8
        %s300 = scalar_lea.vmem [#allocation7], %s299
        // Predicated region
        $region41: #{tpu_custom_call.1} parent=31 // pred_check
          %p301 = pneg %p107
        $region42: #{tpu_custom_call.1} parent=31 // pred_check_branch
          %303 = sbr.rel (%p301) target = $region44
        $region43: #{tpu_custom_call.1} parent=31 // pred_region
          %s305 = ssub.s32 128, 128
          %306 = vsyncadd %s297, %s305
          %s307 = smul.addr %s21, 128
          %s308 = scalar_lea.hbm %s3, %s307
          %s310 = sshll.u32 %s300, 4
          %s311 = int_to_ptr.vmem [resolvable:$true] %s310
          %313 = dma.vmem_to_hbm [thread:$0]  %s311, 128, %s308, %s297
        $region44: #{tpu_custom_call.1} parent=31 // pred_fallthru
          _
      $region32: #{tpu_custom_call.1} parent=5 // pred_fallthru
        _
      %p314 = scmp.le.s32.totalorder 2, %s16
      // Predicated region
      $region45: #{tpu_custom_call.1} parent=5 // pred_check
        %p315 = pneg %p314
      $region46: #{tpu_custom_call.1} parent=5 // pred_check_branch
        %317 = sbr.rel (%p315) target = $region48
      $region47: #{tpu_custom_call.1} parent=5 // pred_region
        %s318 = ssub.s32 %s16, 2
        // Predicated region
        $region49: #{tpu_custom_call.1} parent=47 // pred_check
          %p319 = pneg %p113
        $region50: #{tpu_custom_call.1} parent=47 // pred_check_branch
          %321 = sbr.rel (%p319) target = $region52
        $region51: #{tpu_custom_call.1} parent=47 // pred_region
          %s322 = sand.u32 %s98, 1
          %s323 = scalar_lea.sflag [#allocation4], %s322
          %s324 = sand.u32 %s98, 1
          %s325 = smul.addr %s324, 8
          %s326 = scalar_lea.vmem [#allocation7], %s325
          %327 = dma.done %s323, 128
        $region52: #{tpu_custom_call.1} parent=47 // pred_fallthru
          _
      $region48: #{tpu_custom_call.1} parent=5 // pred_fallthru
        _
    $region6: #{tpu_custom_call.1} parent=1 // loop_footer
      %s20 = sadd.s32 1, %s16
    $region7: #{tpu_custom_call.1} parent=1 // loop_footer_branch
      %15 = sbr.rel target = $region3
    $region8: #{tpu_custom_call.1} parent=1 // loop_exit
      _
    %328 = vsyncpa [#allocation3], 1
    %s329 = scalar_lea.sflag [#allocation3], 1
    %330 = vsyncpa %s329, 1
    %331 = vsyncpa [#allocation6], 1
    %332 = vsyncpa [#allocation4], 1
    %s333 = scalar_lea.sflag [#allocation4], 1
    %334 = vsyncpa %s333, 1

</llo_original>
